<compile_context>
chip_gen: v7x
topology: tpu7x:2x2x1
jax: 0.10.0
libtpu: 0.0.40
codegen_flags: <defaults>
</compile_context>

<pallas_src>
import functools

import jax
import jax.numpy as jnp
from jax.experimental import pallas as pl
from jax.experimental.pallas import tpu as pltpu


def policy_net_kernel(x_ref, w1_ref, b1_ref, w2_ref, b2_ref, o_ref):
    # --- fc1: cast x to bf16 in-register, MXU dot with f32 accumulation ------
    x = x_ref[...].astype(jnp.bfloat16)                        # (tb, in)
    h = jnp.dot(x, w1_ref[...], preferred_element_type=jnp.float32)
    h = jnp.maximum(h + b1_ref[...], 0.0)                      # (tb, hidden) f32
    # --- fc2: bf16 MXU dot, f32 accumulate, bias ------------------------------
    logits = jnp.dot(h.astype(jnp.bfloat16), w2_ref[...],
                     preferred_element_type=jnp.float32)
    logits = logits + b2_ref[...]                              # (tb, out) f32
    # --- numerically stable softmax over exactly out_dim columns --------------
    m = jnp.max(logits, axis=-1, keepdims=True)
    e = jnp.exp(logits - m)
    denom = jnp.sum(e, axis=-1, keepdims=True)
    # approx reciprocal lowers to the otherwise-idle EUP slot.
    o_ref[...] = (e * pl.reciprocal(denom, approx=True)).astype(o_ref.dtype)


def _round_up(n, m):
    return ((n + m - 1) // m) * m


def _choose_block_b(B, in_dim, hidden, out_dim, requested):
    """Pick the batch tile: >=2 grid steps when possible (v7x has 2 TCs) and a
    footprint that fits a conservative VMEM budget (v7x VMEM is only 64 MiB)."""
    bb = max(16, min(_round_up(requested, 16), _round_up(B, 16)))
    if B > 16 and pl.cdiv(B, bb) < 2:
        bb = max(16, _round_up(pl.cdiv(B, 2), 16))

    # Single-buffered resident weights/biases (pl.Buffered(1)).
    w_bytes = in_dim * hidden * 2 + hidden * 4 + hidden * out_dim * 2 + out_dim * 4

    def tile_bytes(b):
        io = 2 * b * in_dim * 4 + 2 * b * out_dim * 4            # dbl-buffered x / out
        live = b * (in_dim * 2 + hidden * 6 + out_dim * 8)       # bf16 x, f32+bf16 h, logits/exp
        return io + live

    budget = 32 << 20                                            # headroom under limit below
    while bb > 16 and w_bytes + tile_bytes(bb) > budget:
        bb = max(16, _round_up(bb // 2, 16))
    return bb


@functools.partial(jax.jit, static_argnames=("block_b",))
def policy_net_forward(x, w1_t, b1, w2_t, b2, *, block_b=512):
    """x: (B, input_size) float32.  w*_t are (in, out), i.e. PyTorch W.T."""
    B, in_dim = x.shape
    hidden = w1_t.shape[1]
    out_dim = w2_t.shape[1]

    block_b = _choose_block_b(B, in_dim, hidden, out_dim, block_b)
    num_blocks = pl.cdiv(B, block_b)

    # Weights/biases are tiny and constant: one cheap cast in the wrapper, then
    # they stay VMEM-resident (constant index_map + Buffered(1)) across all steps.
    w1_bf = w1_t.astype(jnp.bfloat16)
    w2_bf = w2_t.astype(jnp.bfloat16)
    b1_2d = b1.reshape(1, hidden).astype(jnp.float32)
    b2_2d = b2.reshape(1, out_dim).astype(jnp.float32)

    cost = pl.CostEstimate(
        flops=2 * B * (in_dim * hidden + hidden * out_dim),
        transcendentals=B * (out_dim + 1),                       # exp + reciprocal
        bytes_accessed=(B * in_dim * 4 + B * out_dim * 4
                        + in_dim * hidden * 2 + hidden * out_dim * 2
                        + (hidden + out_dim) * 4),
    )

    resident = pl.Buffered(1)   # constant index_map -> no second buffer needed

    out = pl.pallas_call(
        policy_net_kernel,
        out_shape=jax.ShapeDtypeStruct((B, out_dim), jnp.float32),
        grid_spec=pltpu.PrefetchScalarGridSpec(
            num_scalar_prefetch=0,
            grid=(num_blocks,),
            in_specs=[
                pl.BlockSpec((block_b, in_dim), lambda i: (i, 0)),        # x tile (f32)
                pl.BlockSpec((in_dim, hidden), lambda i: (0, 0),
                             pipeline_mode=resident),                      # W1^T
                pl.BlockSpec((1, hidden), lambda i: (0, 0),
                             pipeline_mode=resident),                      # b1
                pl.BlockSpec((hidden, out_dim), lambda i: (0, 0),
                             pipeline_mode=resident),                      # W2^T
                pl.BlockSpec((1, out_dim), lambda i: (0, 0),
                             pipeline_mode=resident),                      # b2
            ],
            out_specs=pl.BlockSpec((block_b, out_dim), lambda i: (i, 0)),
        ),
        compiler_params=pltpu.CompilerParams(
            dimension_semantics=("parallel",),        # shards grid across v7x TCs
            vmem_limit_bytes=48 << 20,                # > v5e 16MiB default, < v7x 64MiB
        ),
        cost_estimate=cost,
    )(x, w1_bf, b1_2d, w2_bf, b2_2d)

    return out


def init_params(key, input_size, hidden_size, output_size):
    """Deterministic PyTorch-style uniform(-1/sqrt(fan_in), 1/sqrt(fan_in)) init."""
    ks = jax.random.split(key, 6)

    def lin(kw, kb, fan_in, fan_out):
        bound = 1.0 / jnp.sqrt(jnp.float32(fan_in))
        w = jax.random.uniform(kw, (fan_out, fan_in), jnp.float32, -bound, bound)
        b = jax.random.uniform(kb, (fan_out,), jnp.float32, -bound, bound)
        return w, b

    w1, b1 = lin(ks[0], ks[1], input_size, hidden_size)    # fc1
    wi, bi = lin(ks[2], ks[3], hidden_size, hidden_size)   # fci (unused in forward)
    w2, b2 = lin(ks[4], ks[5], hidden_size, output_size)   # fc2
    return (w1, b1), (wi, bi), (w2, b2)


if __name__ == "__main__":
    key = jax.random.PRNGKey(0)
    # batch=24 with block_b=16 exercises a 2-step grid (both v7x TCs) and the
    # ragged trailing block path (rows 16..23 valid, 24..31 masked on writeback).
    batch, input_size, hidden_size, output_size = 24, 32, 32, 16

    k_x, k_p = jax.random.split(key)
    x = jax.random.normal(k_x, (batch, input_size), jnp.float32)
    (w1, b1), (wi, bi), (w2, b2) = init_params(
        k_p, input_size, hidden_size, output_size)

    # Pre-transpose weights to (in, out) so the kernel computes y = x @ W + b.
    out = policy_net_forward(x, w1.T, b1, w2.T, b2, block_b=16)
    out = jax.block_until_ready(out)

    # Reference check (plain JAX f32), matching PyTorch semantics.
    # Tolerance reflects the bf16-matmul / approx-reciprocal fast path.
    h_ref = jnp.maximum(x @ w1.T + b1, 0.0)
    logits_ref = h_ref @ w2.T + b2
    ref = jax.nn.softmax(logits_ref, axis=-1)
    assert out.shape == (batch, output_size), "bad output shape"
    assert jnp.allclose(out, ref, atol=5e-3, rtol=1e-3), "mismatch vs reference"
    assert jnp.allclose(jnp.sum(out, axis=-1), 1.0, atol=5e-3), \
        "softmax rows must sum to 1"

    print("KERNEL_OK")
</pallas_src>

<mosaic_0001>
module attributes {stable_mosaic.version = 11 : i64} {
  func.func @policy_net_kernel(%arg0: i32, %arg1: memref<16x32xf32, #tpu.memory_space<vmem>>, %arg2: memref<32x32xbf16, #tpu.memory_space<vmem>>, %arg3: memref<1x32xf32, #tpu.memory_space<vmem>>, %arg4: memref<32x16xbf16, #tpu.memory_space<vmem>>, %arg5: memref<1x16xf32, #tpu.memory_space<vmem>>, %arg6: memref<16x16xf32, #tpu.memory_space<vmem>>) attributes {dimension_semantics = [#tpu.dimension_semantics<parallel>], iteration_bounds = array<i64: 2>, scalar_prefetch = 0 : i64, scratch_operands = 0 : i64, tpu.core_type = #tpu.core_type<tc>, window_params = [{transform_indices = @transform_0, window_bounds = array<i64: 16, 32>}, {pipeline_mode = #tpu.pipeline_mode<synchronous>, transform_indices = @transform_1, window_bounds = array<i64: 32, 32>}, {pipeline_mode = #tpu.pipeline_mode<synchronous>, transform_indices = @transform_2, window_bounds = array<i64: 1, 32>}, {pipeline_mode = #tpu.pipeline_mode<synchronous>, transform_indices = @transform_3, window_bounds = array<i64: 32, 16>}, {pipeline_mode = #tpu.pipeline_mode<synchronous>, transform_indices = @transform_4, window_bounds = array<i64: 1, 16>}, {transform_indices = @transform_5, window_bounds = array<i64: 16, 16>}]} {
    %c0 = arith.constant 0 : index
    %c0_0 = arith.constant 0 : index
    %0 = vector.load %arg1[%c0, %c0_0] : memref<16x32xf32, #tpu.memory_space<vmem>>, vector<16x32xf32>
    %1 = arith.truncf %0 : vector<16x32xf32> to vector<16x32xbf16>
    %c0_1 = arith.constant 0 : index
    %c0_2 = arith.constant 0 : index
    %2 = vector.load %arg2[%c0_1, %c0_2] : memref<32x32xbf16, #tpu.memory_space<vmem>>, vector<32x32xbf16>
    %cst = arith.constant dense<0.000000e+00> : vector<16x32xf32>
    %3 = tpu.matmul %1, %2, %cst {dimension_numbers = #tpu.dot_dimension_numbers<[1], [0], [0], [1], [0, 0, 1, 1], [], []>} : vector<16x32xbf16>, vector<32x32xbf16>, vector<16x32xf32> -> vector<16x32xf32>
    %c0_3 = arith.constant 0 : index
    %c0_4 = arith.constant 0 : index
    %4 = vector.load %arg3[%c0_3, %c0_4] : memref<1x32xf32, #tpu.memory_space<vmem>>, vector<1x32xf32>
    %5 = vector.broadcast %4 : vector<1x32xf32> to vector<16x32xf32>
    %6 = arith.addf %3, %5 : vector<16x32xf32>
    %cst_5 = arith.constant 0.000000e+00 : f32
    %7 = vector.broadcast %cst_5 : f32 to vector<16x32xf32>
    %8 = arith.maximumf %6, %7 : vector<16x32xf32>
    %9 = arith.truncf %8 : vector<16x32xf32> to vector<16x32xbf16>
    %c0_6 = arith.constant 0 : index
    %c0_7 = arith.constant 0 : index
    %10 = vector.load %arg4[%c0_6, %c0_7] : memref<32x16xbf16, #tpu.memory_space<vmem>>, vector<32x16xbf16>
    %cst_8 = arith.constant dense<0.000000e+00> : vector<16x16xf32>
    %11 = tpu.matmul %9, %10, %cst_8 {dimension_numbers = #tpu.dot_dimension_numbers<[1], [0], [0], [1], [0, 0, 1, 1], [], []>} : vector<16x32xbf16>, vector<32x16xbf16>, vector<16x16xf32> -> vector<16x16xf32>
    %c0_9 = arith.constant 0 : index
    %c0_10 = arith.constant 0 : index
    %12 = vector.load %arg5[%c0_9, %c0_10] : memref<1x16xf32, #tpu.memory_space<vmem>>, vector<1x16xf32>
    %13 = vector.broadcast %12 : vector<1x16xf32> to vector<16x16xf32>
    %14 = arith.addf %11, %13 : vector<16x16xf32>
    %cst_11 = arith.constant dense<0xFF800000> : vector<16xf32>
    %15 = vector.multi_reduction <maximumf>, %14, %cst_11 [1] : vector<16x16xf32> to vector<16xf32>
    %16 = vector.shape_cast %15 : vector<16xf32> to vector<16x1xf32>
    %17 = vector.broadcast %16 : vector<16x1xf32> to vector<16x16xf32>
    %18 = arith.subf %14, %17 : vector<16x16xf32>
    %19 = math.exp %18 : vector<16x16xf32>
    %cst_12 = arith.constant dense<0.000000e+00> : vector<16xf32>
    %20 = vector.multi_reduction <add>, %19, %cst_12 [1] : vector<16x16xf32> to vector<16xf32>
    %21 = vector.shape_cast %20 : vector<16xf32> to vector<16x1xf32>
    %22 = tpu.reciprocal %21 {approx = true} : vector<16x1xf32> -> vector<16x1xf32>
    %23 = vector.broadcast %22 : vector<16x1xf32> to vector<16x16xf32>
    %24 = arith.mulf %19, %23 : vector<16x16xf32>
    %c0_13 = arith.constant 0 : index
    %c0_14 = arith.constant 0 : index
    %25 = vector.load %arg6[%c0_13, %c0_14] : memref<16x16xf32, #tpu.memory_space<vmem>>, vector<16x16xf32>
    tpu.vector_store %arg6[%c0_13, %c0_14], %24 {strides = array<i32>} : memref<16x16xf32, #tpu.memory_space<vmem>>, vector<16x16xf32>,
    return
  }
  func.func @transform_0(%arg0: i32) -> (i32, i32) {
    %c0_i32 = arith.constant 0 : i32
    %c0_i32_0 = arith.constant 0 : i32
    return %arg0, %c0_i32 : i32, i32
  }
  func.func @transform_1(%arg0: i32) -> (i32, i32) {
    %c0_i32 = arith.constant 0 : i32
    %c0_i32_0 = arith.constant 0 : i32
    %c0_i32_1 = arith.constant 0 : i32
    return %c0_i32, %c0_i32_0 : i32, i32
  }
  func.func @transform_2(%arg0: i32) -> (i32, i32) {
    %c0_i32 = arith.constant 0 : i32
    %c0_i32_0 = arith.constant 0 : i32
    %c0_i32_1 = arith.constant 0 : i32
    return %c0_i32, %c0_i32_0 : i32, i32
  }
  func.func @transform_3(%arg0: i32) -> (i32, i32) {
    %c0_i32 = arith.constant 0 : i32
    %c0_i32_0 = arith.constant 0 : i32
    %c0_i32_1 = arith.constant 0 : i32
    return %c0_i32, %c0_i32_0 : i32, i32
  }
  func.func @transform_4(%arg0: i32) -> (i32, i32) {
    %c0_i32 = arith.constant 0 : i32
    %c0_i32_0 = arith.constant 0 : i32
    %c0_i32_1 = arith.constant 0 : i32
    return %c0_i32, %c0_i32_0 : i32, i32
  }
  func.func @transform_5(%arg0: i32) -> (i32, i32) {
    %c0_i32 = arith.constant 0 : i32
    %c0_i32_0 = arith.constant 0 : i32
    return %arg0, %c0_i32 : i32, i32
  }
}

</mosaic_0001>

<llo_original>
// kernel: policy_net_forward.1
$region0: #{policy_net_forward.1}
  #allocation0 [shape = 'u32[]', space=smem, size = 0x4, offset = 0x4, fixed_abs, tag = 'smem constant byte address 0x4 - core index']
  #allocation1 [shape = 'u32[144,128]{1,0:T(1,128)}', space=vmem, size = 0x12000, scoped, tag = 'internal scratch']
  %s0 = inlined_call_operand.vmem [shape: f32[24,32], index: 0, kind: input, shape index: {}]
  %s1 = inlined_call_operand.vmem [shape: bf16[32,32], index: 1, kind: input, shape index: {}]
  %s2 = inlined_call_operand.vmem [shape: f32[1,32], index: 2, kind: input, shape index: {}]
  %s3 = inlined_call_operand.vmem [shape: bf16[32,16], index: 3, kind: input, shape index: {}]
  %s4 = inlined_call_operand.vmem [shape: f32[1,16], index: 4, kind: input, shape index: {}]
  %s5 = inlined_call_operand.vmem [shape: f32[24,16], index: 5, kind: output, shape index: {}]
  %s6 = sld [smem:[#allocation0]]
  $region101: #{policy_net_forward.1} parent=0
    _
  %s8 = ssub.s32 1, %s6
  %s9 = scalar_select 0, %s8, %s6
  $region1: #{policy_net_forward.1} parent=0
    #allocation2 [shape = 'u8[16384]{0}', space=vmem, size = 0x4000, scoped, tag = 'output window, operand 0']
    loop: start=0, step=1, limit=4
    $region2: #{policy_net_forward.1} parent=1 // loop_pre_header
      _
    $region3: #{policy_net_forward.1} parent=1 // loop_header
      %s11 = sphi 0, %s15
      %p12 = scmp.ge.s32.totalorder %s11, 4
      %s21 = sphi 0, %s23
      %s24 = sphi 0, %s21
      %s25 = sphi 0, %s24
      %s41 = sphi 0, %s25
      %s45 = sphi 0, %s45
      %s47 = sphi 0, %s45
      %s48 = sphi 0, %s47
      %s62 = sphi 0, %s48
      %s66 = sphi 0, %s66
      %s68 = sphi 0, %s66
      %s69 = sphi 0, %s68
      %s83 = sphi 0, %s69
      %s87 = sphi 0, %s87
      %s89 = sphi 0, %s87
      %s90 = sphi 0, %s89
      %s104 = sphi 0, %s90
      %s108 = sphi 0, %s108
      %s110 = sphi 0, %s108
      %s111 = sphi 0, %s110
      %s125 = sphi 0, %s111
      %s131 = sphi 0, %s133
      %s134 = sphi 0, %s131
      %s135 = sphi 0, %s134
      %s151 = sphi 0, %s135
    $region4: #{policy_net_forward.1} parent=1 // loop_header_branch
      %14 = sbr.rel (%p12) target = $region8
    $region5: #{policy_net_forward.1} parent=1 // loop_body
      %s16 = ssub.s32 %s11, 1
      %s17 = ssub.s32 %s11, 2
      %s18 = sadd.s32 %s11, 1
      %s19 = ssub.s32 %s11, %s18
      %p20 = scmp.eq.s32.totalorder %s19, 0
      %s22 = sadd.s32 %s21, 1
      %s23 = scalar_select %p20, %s21, %s22
      %p26 = pneg %p20
      %p27 = scmp.eq.s32.totalorder %s11, 1
      %p28 = por %p26, %p27
      %p29 = scmp.ne.s32.totalorder %s21, %s24
      %p30 = scmp.eq.s32.totalorder %s11, 0
      %p31 = por %p29, %p30
      %p32 = scmp.ne.s32.totalorder %s21, %s24
      %p33 = scmp.eq.s32.totalorder %s16, 1
      %p34 = por %p32, %p33
      %p35 = scmp.ne.s32.totalorder %s24, %s25
      %p36 = scmp.eq.s32.totalorder %s16, 0
      %p37 = por %p35, %p36
      %p38 = scmp.ne.s32.totalorder %s24, %s25
      %p39 = scmp.eq.s32.totalorder %s17, 1
      %p40 = por %p38, %p39
      %p42 = scmp.ne.s32.totalorder %s25, %s41
      %p43 = scmp.eq.s32.totalorder %s17, 0
      %p44 = por %p42, %p43
      %s46 = sadd.s32 %s45, 1
      %p49 = scmp.eq.s32.totalorder %s11, 1
      %p50 = scmp.ne.s32.totalorder %s45, %s47
      %p51 = scmp.eq.s32.totalorder %s11, 0
      %p52 = por %p50, %p51
      %p53 = scmp.ne.s32.totalorder %s45, %s47
      %p54 = scmp.eq.s32.totalorder %s16, 1
      %p55 = por %p53, %p54
      %p56 = scmp.ne.s32.totalorder %s47, %s48
      %p57 = scmp.eq.s32.totalorder %s16, 0
      %p58 = por %p56, %p57
      %p59 = scmp.ne.s32.totalorder %s47, %s48
      %p60 = scmp.eq.s32.totalorder %s17, 1
      %p61 = por %p59, %p60
      %p63 = scmp.ne.s32.totalorder %s48, %s62
      %p64 = scmp.eq.s32.totalorder %s17, 0
      %p65 = por %p63, %p64
      %s67 = sadd.s32 %s66, 1
      %p70 = scmp.eq.s32.totalorder %s11, 1
      %p71 = scmp.ne.s32.totalorder %s66, %s68
      %p72 = scmp.eq.s32.totalorder %s11, 0
      %p73 = por %p71, %p72
      %p74 = scmp.ne.s32.totalorder %s66, %s68
      %p75 = scmp.eq.s32.totalorder %s16, 1
      %p76 = por %p74, %p75
      %p77 = scmp.ne.s32.totalorder %s68, %s69
      %p78 = scmp.eq.s32.totalorder %s16, 0
      %p79 = por %p77, %p78
      %p80 = scmp.ne.s32.totalorder %s68, %s69
      %p81 = scmp.eq.s32.totalorder %s17, 1
      %p82 = por %p80, %p81
      %p84 = scmp.ne.s32.totalorder %s69, %s83
      %p85 = scmp.eq.s32.totalorder %s17, 0
      %p86 = por %p84, %p85
      %s88 = sadd.s32 %s87, 1
      %p91 = scmp.eq.s32.totalorder %s11, 1
      %p92 = scmp.ne.s32.totalorder %s87, %s89
      %p93 = scmp.eq.s32.totalorder %s11, 0
      %p94 = por %p92, %p93
      %p95 = scmp.ne.s32.totalorder %s87, %s89
      %p96 = scmp.eq.s32.totalorder %s16, 1
      %p97 = por %p95, %p96
      %p98 = scmp.ne.s32.totalorder %s89, %s90
      %p99 = scmp.eq.s32.totalorder %s16, 0
      %p100 = por %p98, %p99
      %p101 = scmp.ne.s32.totalorder %s89, %s90
      %p102 = scmp.eq.s32.totalorder %s17, 1
      %p103 = por %p101, %p102
      %p105 = scmp.ne.s32.totalorder %s90, %s104
      %p106 = scmp.eq.s32.totalorder %s17, 0
      %p107 = por %p105, %p106
      %s109 = sadd.s32 %s108, 1
      %p112 = scmp.eq.s32.totalorder %s11, 1
      %p113 = scmp.ne.s32.totalorder %s108, %s110
      %p114 = scmp.eq.s32.totalorder %s11, 0
      %p115 = por %p113, %p114
      %p116 = scmp.ne.s32.totalorder %s108, %s110
      %p117 = scmp.eq.s32.totalorder %s16, 1
      %p118 = por %p116, %p117
      %p119 = scmp.ne.s32.totalorder %s110, %s111
      %p120 = scmp.eq.s32.totalorder %s16, 0
      %p121 = por %p119, %p120
      %p122 = scmp.ne.s32.totalorder %s110, %s111
      %p123 = scmp.eq.s32.totalorder %s17, 1
      %p124 = por %p122, %p123
      %p126 = scmp.ne.s32.totalorder %s111, %s125
      %p127 = scmp.eq.s32.totalorder %s17, 0
      %p128 = por %p126, %p127
      %s129 = ssub.s32 %s11, %s18
      %p130 = scmp.eq.s32.totalorder %s129, 0
      %s132 = sadd.s32 %s131, 1
      %s133 = scalar_select %p130, %s131, %s132
      %p136 = pneg %p130
      %p137 = scmp.eq.s32.totalorder %s11, 1
      %p138 = por %p136, %p137
      %p139 = scmp.ne.s32.totalorder %s131, %s134
      %p140 = scmp.eq.s32.totalorder %s11, 0
      %p141 = por %p139, %p140
      %p142 = scmp.ne.s32.totalorder %s131, %s134
      %p143 = scmp.eq.s32.totalorder %s16, 1
      %p144 = por %p142, %p143
      %p145 = scmp.ne.s32.totalorder %s134, %s135
      %p146 = scmp.eq.s32.totalorder %s16, 0
      %p147 = por %p145, %p146
      %p148 = scmp.ne.s32.totalorder %s134, %s135
      %p149 = scmp.eq.s32.totalorder %s17, 1
      %p150 = por %p148, %p149
      %p152 = scmp.ne.s32.totalorder %s135, %s151
      %p153 = scmp.eq.s32.totalorder %s17, 0
      %p154 = por %p152, %p153
      %p155 = scmp.le.s32.totalorder 1, %s11
      %p156 = scmp.lt.s32.totalorder %s11, 3
      %p157 = pnand %p155, %p156
      %p158 = pneg %p157
      // Predicated region
      $region9: #{policy_net_forward.1} parent=5 // pred_check
        _
      $region10: #{policy_net_forward.1} parent=5 // pred_check_branch
        %160 = sbr.rel (%p157) target = $region12
      $region11: #{policy_net_forward.1} parent=5 // pred_region
        %s161 = ssub.s32 %s11, 1
        // Predicated region
        $region13: #{policy_net_forward.1} parent=11 // pred_check
          %p162 = pneg %p58
        $region14: #{policy_net_forward.1} parent=11 // pred_check_branch
          %164 = sbr.rel (%p162) target = $region16
        $region15: #{policy_net_forward.1} parent=11 // pred_region
          _
        $region16: #{policy_net_forward.1} parent=11 // pred_fallthru
          _
        // Predicated region
        $region17: #{policy_net_forward.1} parent=11 // pred_check
          %p165 = pneg %p79
        $region18: #{policy_net_forward.1} parent=11 // pred_check_branch
          %167 = sbr.rel (%p165) target = $region20
        $region19: #{policy_net_forward.1} parent=11 // pred_region
          _
        $region20: #{policy_net_forward.1} parent=11 // pred_fallthru
          _
        // Predicated region
        $region21: #{policy_net_forward.1} parent=11 // pred_check
          %p168 = pneg %p100
        $region22: #{policy_net_forward.1} parent=11 // pred_check_branch
          %170 = sbr.rel (%p168) target = $region24
        $region23: #{policy_net_forward.1} parent=11 // pred_region
          _
        $region24: #{policy_net_forward.1} parent=11 // pred_fallthru
          _
        // Predicated region
        $region25: #{policy_net_forward.1} parent=11 // pred_check
          %p171 = pneg %p121
        $region26: #{policy_net_forward.1} parent=11 // pred_check_branch
          %173 = sbr.rel (%p171) target = $region28
        $region27: #{policy_net_forward.1} parent=11 // pred_region
          _
        $region28: #{policy_net_forward.1} parent=11 // pred_fallthru
          _
      $region12: #{policy_net_forward.1} parent=5 // pred_fallthru
        _
      %p174 = scmp.lt.s32.totalorder %s11, 2
      // Predicated region
      $region29: #{policy_net_forward.1} parent=5 // pred_check
        %p175 = pneg %p174
      $region30: #{policy_net_forward.1} parent=5 // pred_check_branch
        %177 = sbr.rel (%p175) target = $region32
      $region31: #{policy_net_forward.1} parent=5 // pred_region
        // Predicated region
        $region33: #{policy_net_forward.1} parent=31 // pred_check
          %p178 = pneg %p31
        $region34: #{policy_net_forward.1} parent=31 // pred_check_branch
          %180 = sbr.rel (%p178) target = $region36
        $region35: #{policy_net_forward.1} parent=31 // pred_region
          %s181 = smul.u32 2, %s11
          %s182 = ssub.s32 3, %s181
          %p183 = scmp.lt.s32.totalorder %s182, 2
          %s184 = scalar_select %p183, %s182, 2
          %s185 = smul.u32 128, %s184
          %p186 = scmp.lt.s32.totalorder %s181, 2
          %s187 = scalar_select %p186, %s181, 2
          %s188 = smul.addr %s187, 8
          %s189 = scalar_lea.vmem %s0, %s188
          %s190 = smul.u32 2, %s11
          %s191 = ssub.s32 3, %s190
          %p192 = scmp.lt.s32.totalorder %s191, 2
          %s193 = scalar_select %p192, %s191, 2
          %s194 = smul.u32 128, %s193
        $region36: #{policy_net_forward.1} parent=31 // pred_fallthru
          _
      $region32: #{policy_net_forward.1} parent=5 // pred_fallthru
        _
      %p195 = scmp.le.s32.totalorder 1, %s11
      %p196 = scmp.lt.s32.totalorder %s11, 3
      %p197 = pnand %p195, %p196
      %p198 = pneg %p197
      // Predicated region
      $region37: #{policy_net_forward.1} parent=5 // pred_check
        _
      $region38: #{policy_net_forward.1} parent=5 // pred_check_branch
        %200 = sbr.rel (%p197) target = $region40
      $region39: #{policy_net_forward.1} parent=5 // pred_region
        %s201 = ssub.s32 %s11, 1
        %s202 = smul.u32 2, %s16
        %s203 = ssub.s32 3, %s202
        %p204 = scmp.lt.s32.totalorder %s203, 2
        %s205 = scalar_select %p204, %s203, 2
        %s206 = smul.u32 128, %s205
        %p207 = scmp.lt.s32.totalorder %s202, 2
        %s208 = scalar_select %p207, %s202, 2
        %s209 = smul.addr %s208, 8
        %s210 = scalar_lea.vmem %s0, %s209
        %p211 = pneg %p37
        %p212 = pneg %p34
        %p213 = pneg %p58
        %p214 = pneg %p55
        %p215 = pneg %p79
        %p216 = pneg %p76
        %p217 = pneg %p100
        %p218 = pneg %p97
        %p219 = pneg %p121
        %p220 = pneg %p118
        %p221 = pneg %p147
        %p222 = pneg %p144
        %s223 = sand.u32 %s134, 1
        %s224 = sand.u32 %s134, 1
        %s225 = smul.addr %s224, 16
        %s226 = scalar_lea.vmem [#allocation2], %s225
        %s227 = smul.u32 2, %s16
        %s228 = ssub.s32 3, %s227
        %p229 = scmp.lt.s32.totalorder %s228, 2
        %s230 = scalar_select %p229, %s228, 2
        %s231 = smul.u32 128, %s230
        %p232 = scmp.lt.s32.totalorder %s227, 2
        %s233 = scalar_select %p232, %s227, 2
        %s234 = smul.addr %s233, 8
        %s235 = scalar_lea.vmem %s0, %s234
        %s236 = smul.u32 2, %s16
        %s237 = ssub.s32 3, %s236
        %p238 = scmp.lt.s32.totalorder %s237, 2
        %s239 = scalar_select %p238, %s237, 2
        %s240 = smul.u32 128, %s239
        %s241 = smul.u32 2, %s16
        %s242 = ssub.s32 3, %s241
        %p243 = scmp.lt.s32.totalorder %s242, 2
        %s244 = scalar_select %p243, %s242, 2
        %s245 = smul.u32 128, %s244
        %v247 = vld [vmem:[%s235] sm:$0xff]
        %v248 = vld [vmem:[%s235 + $0x8] sm:$0xff]
        %v249 = vpack.c.bf16 %v248, %v247
        %v250 = vld [vmem:[%s1] sm:$0xf]
        %v251 = vld [vmem:[%s1 + $0x4] sm:$0xf]
        %v252 = vld [vmem:[%s1 + $0x8] sm:$0xf]
        %v253 = vld [vmem:[%s1 + $0xc] sm:$0xf]
        %v254 = vld [vmem:[%s2] sm:$0x1]
        %v256 = vlaneseq
        %v257 = vshrl.u32 %v256, 7
        %v258 = vsub.s32 0, %v257
        %v259 = vrot.slane %v254, %v258
        %v265 = vunpack.c.l.b16 %v250
        %v266 = vunpack.c.l.b16 %v251
        %v267 = vunpack.c.l.b16 %v252
        %v268 = vunpack.c.l.b16 %v253
        %v269 = vpack.c.b16 %v266, %v265
        %v270 = vpack.c.b16 %v268, %v267
        %vm273 = vcmask 261120
        %v275 = vsel %vm273, %v249, 0
        %277 = vmatprep.subr.bf16.mxu0 0
        %278 = vmatpush1.bf16.msra.mxu0 %v269
        %279 = vmatprep.subr.bf16.mxu0 0
        %280 = vmatpush1.bf16.msra.mxu0 %v270
        %281 = vmatprep.subr.bf16.mxu0 0
        %282 = vmatpush1.bf16.msra.mxu0 0
        %283 = vmatprep.subr.bf16.mxu0 0
        %284 = vmatpush1.bf16.msra.mxu0 0
        %285 = vmatprep.subr.bf16.mxu0 0
        %286 = vmatpush1.bf16.msra.mxu0 0
        %287 = vmatprep.subr.bf16.mxu0 0
        %288 = vmatpush1.bf16.msra.mxu0 0
        %289 = vmatprep.subr.bf16.mxu0 0
        %290 = vmatpush1.bf16.msra.mxu0 0
        %291 = vmatprep.subr.bf16.mxu0 0
        %292 = vmatpush1.bf16.msra.mxu0 0
        %293 = vmatprep.subr.bf16.mxu0 0
        %294 = vmatpush1.bf16.msra.mxu0 0
        %295 = vmatprep.subr.bf16.mxu0 0
        %296 = vmatpush1.bf16.msra.mxu0 0
        %297 = vmatprep.subr.bf16.mxu0 0
        %298 = vmatpush1.bf16.msra.mxu0 0
        %299 = vmatprep.subr.bf16.mxu0 0
        %300 = vmatpush1.bf16.msra.mxu0 0
        %301 = vmatprep.subr.bf16.mxu0 0
        %302 = vmatpush1.bf16.msra.mxu0 0
        %303 = vmatprep.subr.bf16.mxu0 0
        %304 = vmatpush1.bf16.msra.mxu0 0
        %305 = vmatprep.subr.bf16.mxu0 0
        %306 = vmatpush1.bf16.msra.mxu0 0
        %307 = vmatprep.subr.bf16.mxu0 0
        %308 = vmatpush1.bf16.msra.mxu0 0
        %309 = vmatprep.mubr.bf16.mxu0 0
        %310 = vmatmul.mubr.bf16.gmra.mrb[0].mxu0 %v275
        %v311 = vpop.f32.mrb[0].mxu0
        %v312 = vadd.f32 %v259, %v311
        %v313 = vpop.f32.mrb[0].mxu0
        %v314 = vpop.f32.mrb[0].mxu0
        %v315 = vadd.f32 %v259, %v314
        %v316 = vpop.f32.mrb[0].mxu0
        %317 = vdwg.mxu0
        %v318 = vmax.f32 %v312, 0.0
        %v319 = vmax.f32 %v315, 0.0
        %v320 = vpack.c.bf16 %v319, %v318
        %v321 = vld [vmem:[%s3] sm:$0xf]
        %v322 = vld [vmem:[%s3 + $0x4] sm:$0xf]
        %v323 = vld [vmem:[%s3 + $0x8] sm:$0xf]
        %v324 = vld [vmem:[%s3 + $0xc] sm:$0xf]
        %v325 = vld [vmem:[%s4] sm:$0x1]
        %v327 = vlaneseq
        %v328 = vshrl.u32 %v327, 7
        %v329 = vsub.s32 0, %v328
        %v330 = vrot.slane %v325, %v329
        %v336 = vunpack.c.l.b16 %v321
        %v337 = vunpack.c.l.b16 %v322
        %v338 = vunpack.c.l.b16 %v323
        %v339 = vunpack.c.l.b16 %v324
        %v340 = vpack.c.b16 %v337, %v336
        %v341 = vpack.c.b16 %v339, %v338
        %v345 = vsel %vm273, %v320, 0
        %347 = vmatprep.subr.bf16.mxu0 0
        %348 = vmatpush1.bf16.msra.mxu0 %v340
        %349 = vmatprep.subr.bf16.mxu0 0
        %350 = vmatpush1.bf16.msra.mxu0 %v341
        %351 = vmatprep.subr.bf16.mxu0 0
        %352 = vmatpush1.bf16.msra.mxu0 0
        %353 = vmatprep.subr.bf16.mxu0 0
        %354 = vmatpush1.bf16.msra.mxu0 0
        %355 = vmatprep.subr.bf16.mxu0 0
        %356 = vmatpush1.bf16.msra.mxu0 0
        %357 = vmatprep.subr.bf16.mxu0 0
        %358 = vmatpush1.bf16.msra.mxu0 0
        %359 = vmatprep.subr.bf16.mxu0 0
        %360 = vmatpush1.bf16.msra.mxu0 0
        %361 = vmatprep.subr.bf16.mxu0 0
        %362 = vmatpush1.bf16.msra.mxu0 0
        %363 = vmatprep.subr.bf16.mxu0 0
        %364 = vmatpush1.bf16.msra.mxu0 0
        %365 = vmatprep.subr.bf16.mxu0 0
        %366 = vmatpush1.bf16.msra.mxu0 0
        %367 = vmatprep.subr.bf16.mxu0 0
        %368 = vmatpush1.bf16.msra.mxu0 0
        %369 = vmatprep.subr.bf16.mxu0 0
        %370 = vmatpush1.bf16.msra.mxu0 0
        %371 = vmatprep.subr.bf16.mxu0 0
        %372 = vmatpush1.bf16.msra.mxu0 0
        %373 = vmatprep.subr.bf16.mxu0 0
        %374 = vmatpush1.bf16.msra.mxu0 0
        %375 = vmatprep.subr.bf16.mxu0 0
        %376 = vmatpush1.bf16.msra.mxu0 0
        %377 = vmatprep.subr.bf16.mxu0 0
        %378 = vmatpush1.bf16.msra.mxu0 0
        %379 = vmatprep.mubr.bf16.mxu0 0
        %380 = vmatmul.mubr.bf16.gmra.mrb[0].mxu0 %v345
        %v381 = vpop.f32.mrb[0].mxu0
        %v382 = vadd.f32 %v330, %v381
        %v383 = vpop.f32.mrb[0].mxu0
        %v384 = vpop.f32.mrb[0].mxu0
        %v385 = vadd.f32 %v330, %v384
        %v386 = vpop.f32.mrb[0].mxu0
        %387 = vdwg.mxu0
        %vm388 = vcmask 130048
        %v389 = vsel %vm388, %v382, -inf
        %390 = vmax.xlane.f32.xlu0 %v389
        %v391 = vpop.xlane.xlu0 %390
        %v392 = vsel %vm388, %v385, -inf
        %393 = vmax.xlane.f32.xlu0 %v392
        %v394 = vpop.xlane.xlu0 %393
        %v395 = vsub.f32 %v382, %v391
        %v396 = vsub.f32 %v385, %v394
        %v397 = vmul.f32 %v395, 1.442695
        %v398 = vpow.pop %v397
        %v399 = vmul.f32 %v396, 1.442695
        %v400 = vpow.pop %v399
        %v401 = vsel %vm388, %v398, 0.0
        %402 = vadd.xlane.f32.xlu0 %v401
        %v403 = vpop.xlane.xlu0 %402
        %v404 = vsel %vm388, %v400, 0.0
        %405 = vadd.xlane.f32.xlu0 %v404
        %v406 = vpop.xlane.xlu0 %405
        %v407 = vrcp.pop %v403
        %v408 = vrcp.pop %v406
        %v409 = vmul.f32 %v398, %v407
        %v410 = vmul.f32 %v400, %v408
        %411 = vst.msk [vmem:[%s226] sm:$0xff] %vm388, %v409
        %412 = vst.msk [vmem:[%s226 + $0x8] sm:$0xff] %vm388, %v410
        %s413 = sand.u32 %s134, 1
        %s414 = sand.u32 %s134, 1
        %s415 = smul.addr %s414, 16
        %s416 = scalar_lea.vmem [#allocation2], %s415
        // Predicated region
        $region41: #{policy_net_forward.1} parent=39 // pred_check
          %p417 = pneg %p144
        $region42: #{policy_net_forward.1} parent=39 // pred_check_branch
          %419 = sbr.rel (%p417) target = $region44
        $region43: #{policy_net_forward.1} parent=39 // pred_region
          %s420 = smul.u32 2, %s16
          %s421 = ssub.s32 3, %s420
          %p422 = scmp.lt.s32.totalorder %s421, 2
          %s423 = scalar_select %p422, %s421, 2
          %s424 = smul.u32 128, %s423
          %p425 = scmp.ne.s32.totalorder 0, %s424
          %s426 = smul.addr %s420, 8
          %s427 = scalar_lea.vmem %s5, %s426
          // Predicated region
          $region45: #{policy_net_forward.1} parent=43 // pred_check
            %p428 = pneg %p425
          $region46: #{policy_net_forward.1} parent=43 // pred_check_branch
            %430 = sbr.rel (%p428) target = $region48
          $region47: #{policy_net_forward.1} parent=43 // pred_region
            // Predicated region
            $region49: #{policy_net_forward.1} parent=47 // pred_check
              _
            $region50: #{policy_net_forward.1} parent=47 // pred_check_branch
              %432 = sbr.rel (0) target = $region52
            $region51: #{policy_net_forward.1} parent=47 // pred_region
              // Predicated region
              $region71: #{policy_net_forward.1} parent=51 // pred_check
                _
              $region72: #{policy_net_forward.1} parent=51 // pred_check_branch
                %483 = sbr.rel (0) target = $region74
              $region73: #{policy_net_forward.1} parent=51 // pred_region
                %s484 = sshrl.u32 %s423, 1
                // While loop
                $region75: #{policy_net_forward.1} parent=73 // loop_pre_header
                  _
                $region76: #{policy_net_forward.1} parent=73 // loop_header
                  %s486 = sphi 0, %s488
                  %p487 = scmp.ge.s32.totalorder %s486, %s484
                  %s491 = sphi 0, %s500
                  %s492 = sphi %s416, %s503
                  %s493 = sphi %s427, %s504
                $region77: #{policy_net_forward.1} parent=73 // loop_header_branch
                  %490 = sbr.rel (%p487) target = $region81
                $region78: #{policy_net_forward.1} parent=73 // loop_body
                  %v494 = vld [vmem:[%s492] sm:$0xff]
                  %495 = vst [vmem:[%s493] sm:$0xff] %v494
                  %v496 = vld [vmem:[%s492 + $0x8] sm:$0xff]
                  %497 = vst [vmem:[%s493 + $0x8] sm:$0xff] %v496
                  %s498 = sadd.s32 1, %s491
                  %p499 = scmp.ge.s32.totalorder %s498, %s484
                  %s500 = scalar_select %p499, 0, %s498
                  %s501 = smul.u32 %s500, 16
                  %s502 = smul.u32 %s500, 16
                  %s503 = scalar_lea.vmem %s416, %s501 [#allocation2]
                  %s504 = scalar_lea.vmem %s427, %s502
                $region79: #{policy_net_forward.1} parent=73 // loop_footer
                  %s488 = sadd.s32 %s486, 1
                $region80: #{policy_net_forward.1} parent=73 // loop_footer_branch
                  %485 = sbr.rel target = $region76
                $region81: #{policy_net_forward.1} parent=73 // loop_exit
                  _
                %s505 = sshrl.u32 %s423, 1
                %s506 = sand.u32 %s423, 1
                %s507 = smul.u32 %s505, 2
                %s508 = smul.u32 8, %s507
                %s509 = scalar_lea.vmem %s416, %s508 [#allocation2]
                %s510 = smul.u32 8, %s507
                %s511 = scalar_lea.vmem %s427, %s510
                // While loop
                $region82: #{policy_net_forward.1} parent=73 // loop_pre_header
                  _
                $region83: #{policy_net_forward.1} parent=73 // loop_header
                  %s513 = sphi 0, %s515
                  %p514 = scmp.ge.s32.totalorder %s513, %s506
                  %s518 = sphi 0, %s525
                  %s519 = sphi %s509, %s528
                  %s520 = sphi %s511, %s529
                $region84: #{policy_net_forward.1} parent=73 // loop_header_branch
                  %517 = sbr.rel (%p514) target = $region88
                $region85: #{policy_net_forward.1} parent=73 // loop_body
                  %v521 = vld [vmem:[%s519] sm:$0xff]
                  %522 = vst [vmem:[%s520] sm:$0xff] %v521
                  %s523 = sadd.s32 1, %s518
                  %p524 = scmp.ge.s32.totalorder %s523, %s506
                  %s525 = scalar_select %p524, 0, %s523
                  %s526 = smul.u32 %s525, 8
                  %s527 = smul.u32 %s525, 8
                  %s528 = scalar_lea.vmem %s509, %s526 [#allocation2]
                  %s529 = scalar_lea.vmem %s511, %s527
                $region86: #{policy_net_forward.1} parent=73 // loop_footer
                  %s515 = sadd.s32 %s513, 1
                $region87: #{policy_net_forward.1} parent=73 // loop_footer_branch
                  %512 = sbr.rel target = $region83
                $region88: #{policy_net_forward.1} parent=73 // loop_exit
                  _
              $region74: #{policy_net_forward.1} parent=51 // pred_fallthru
                _
              // Predicated region
              $region89: #{policy_net_forward.1} parent=51 // pred_check
                _
              $region90: #{policy_net_forward.1} parent=51 // pred_check_branch
                %531 = sbr.rel target = $region92
              $region91: #{policy_net_forward.1} parent=51 // pred_region
                _
              $region92: #{policy_net_forward.1} parent=51 // pred_fallthru
                _
            $region52: #{policy_net_forward.1} parent=47 // pred_fallthru
              _
            // Predicated region
            $region53: #{policy_net_forward.1} parent=47 // pred_check
              _
            $region54: #{policy_net_forward.1} parent=47 // pred_check_branch
              %434 = sbr.rel target = $region56
            $region55: #{policy_net_forward.1} parent=47 // pred_region
              %s436 = sshrl.u32 %s423, 1
              // While loop
              $region57: #{policy_net_forward.1} parent=55 // loop_pre_header
                _
              $region58: #{policy_net_forward.1} parent=55 // loop_header
                %s438 = sphi 0, %s440
                %p439 = scmp.ge.s32.totalorder %s438, %s436
                %s443 = sphi 0, %s452
                %s444 = sphi %s416, %s455
                %s445 = sphi %s427, %s456
              $region59: #{policy_net_forward.1} parent=55 // loop_header_branch
                %442 = sbr.rel (%p439) target = $region63
              $region60: #{policy_net_forward.1} parent=55 // loop_body
                %v446 = vld [vmem:[%s444] sm:$0xff]
                %447 = vst [vmem:[%s445] sm:$0xff] %v446
                %v448 = vld [vmem:[%s444 + $0x8] sm:$0xff]
                %449 = vst [vmem:[%s445 + $0x8] sm:$0xff] %v448
                %s450 = sadd.s32 1, %s443
                %p451 = scmp.ge.s32.totalorder %s450, %s436
                %s452 = scalar_select %p451, 0, %s450
                %s453 = smul.u32 %s452, 16
                %s454 = smul.u32 %s452, 16
                %s455 = scalar_lea.vmem %s416, %s453 [#allocation2]
                %s456 = scalar_lea.vmem %s427, %s454
              $region61: #{policy_net_forward.1} parent=55 // loop_footer
                %s440 = sadd.s32 %s438, 1
              $region62: #{policy_net_forward.1} parent=55 // loop_footer_branch
                %437 = sbr.rel target = $region58
              $region63: #{policy_net_forward.1} parent=55 // loop_exit
                _
              %s457 = sshrl.u32 %s423, 1
              %s458 = sand.u32 %s423, 1
              %s459 = smul.u32 %s457, 2
              %s460 = smul.u32 8, %s459
              %s461 = scalar_lea.vmem %s416, %s460 [#allocation2]
              %s462 = smul.u32 8, %s459
              %s463 = scalar_lea.vmem %s427, %s462
              // While loop
              $region64: #{policy_net_forward.1} parent=55 // loop_pre_header
                _
              $region65: #{policy_net_forward.1} parent=55 // loop_header
                %s465 = sphi 0, %s467
                %p466 = scmp.ge.s32.totalorder %s465, %s458
                %s470 = sphi 0, %s477
                %s471 = sphi %s461, %s480
                %s472 = sphi %s463, %s481
              $region66: #{policy_net_forward.1} parent=55 // loop_header_branch
                %469 = sbr.rel (%p466) target = $region70
              $region67: #{policy_net_forward.1} parent=55 // loop_body
                %v473 = vld [vmem:[%s471] sm:$0xff]
                %474 = vst [vmem:[%s472] sm:$0xff] %v473
                %s475 = sadd.s32 1, %s470
                %p476 = scmp.ge.s32.totalorder %s475, %s458
                %s477 = scalar_select %p476, 0, %s475
                %s478 = smul.u32 %s477, 8
                %s479 = smul.u32 %s477, 8
                %s480 = scalar_lea.vmem %s461, %s478 [#allocation2]
                %s481 = scalar_lea.vmem %s463, %s479
              $region68: #{policy_net_forward.1} parent=55 // loop_footer
                %s467 = sadd.s32 %s465, 1
              $region69: #{policy_net_forward.1} parent=55 // loop_footer_branch
                %464 = sbr.rel target = $region65
              $region70: #{policy_net_forward.1} parent=55 // loop_exit
                _
            $region56: #{policy_net_forward.1} parent=47 // pred_fallthru
              _
          $region48: #{policy_net_forward.1} parent=43 // pred_fallthru
            _
          %532 = vnop
        $region44: #{policy_net_forward.1} parent=39 // pred_fallthru
          _
      $region40: #{policy_net_forward.1} parent=5 // pred_fallthru
        _
      %p533 = scmp.le.s32.totalorder 2, %s11
      // Predicated region
      $region93: #{policy_net_forward.1} parent=5 // pred_check
        %p534 = pneg %p533
      $region94: #{policy_net_forward.1} parent=5 // pred_check_branch
        %536 = sbr.rel (%p534) target = $region96
      $region95: #{policy_net_forward.1} parent=5 // pred_region
        %s537 = ssub.s32 %s11, 2
        // Predicated region
        $region97: #{policy_net_forward.1} parent=95 // pred_check
          %p538 = pneg %p150
        $region98: #{policy_net_forward.1} parent=95 // pred_check_branch
          %540 = sbr.rel (%p538) target = $region100
        $region99: #{policy_net_forward.1} parent=95 // pred_region
          %s541 = sand.u32 %s135, 1
          %s542 = sand.u32 %s135, 1
          %s543 = smul.addr %s542, 16
          %s544 = scalar_lea.vmem [#allocation2], %s543
        $region100: #{policy_net_forward.1} parent=95 // pred_fallthru
          _
      $region96: #{policy_net_forward.1} parent=5 // pred_fallthru
        _
    $region6: #{policy_net_forward.1} parent=1 // loop_footer
      %s15 = sadd.s32 1, %s11
    $region7: #{policy_net_forward.1} parent=1 // loop_footer_branch
      %10 = sbr.rel target = $region3
    $region8: #{policy_net_forward.1} parent=1 // loop_exit
      _

</llo_original>
